<compile_context>
chip_gen: v6e
topology: v6e:2x2x1
jax: 0.10.0
libtpu: 0.0.40
codegen_flags: <defaults>
</compile_context>

<pallas_src>
import jax
import jax.numpy as jnp
from jax.experimental import pallas as pl
from jax.experimental.pallas import tpu as pltpu

LANE = 128
HIDDEN = 64
OUTPUT = 1
BRANCH_IN = 20   # len(branch_columns)
TRUNK_IN = 1     # len(trunk_columns)
FEAT = BRANCH_IN + TRUNK_IN          # 21 fused features
FEAT_PAD = 32                        # padded to 4 sublane-groups (was 128)
NUM_LAYERS = 5

# (out, in) per layer, torch nn.Linear layout.
BRANCH_DIMS = [(64, BRANCH_IN), (32, 64), (16, 32), (8, 16), (OUTPUT, 8)]
TRUNK_DIMS = [(64, TRUNK_IN), (32, 64), (16, 32), (8, 16), (OUTPUT, 8)]

# Slimmed fused-layer geometry inside the packed slab:
# (row_offset, fused_out, fused_in) -- feature-major [out, in] blocks.
LAYER_GEOM = [
    (0,   128, FEAT_PAD),   # 64x20 branch  + 64x1  trunk  (cols 21:32 zero)
    (128,  64, 128),        # 32x64 branch  + 32x64 trunk
    (192,  32,  64),        # 16x32 branch  + 16x32 trunk
    (224,  16,  32),        #  8x16 branch  +  8x16 trunk
    (240,   8,  16),        #  1x8  branch  +  1x8  trunk  (rows 2:8 zero)
]
BIAS_ROW0 = 248             # bias block: column l holds fused bias of layer l
SLAB_ROWS = 384             # 248 + 128 = 376, padded to a multiple of 8


def _round_up(x, m):
    return ((x + m - 1) // m) * m


# --------------------------------------------------------------------------- #
# Kernel
# --------------------------------------------------------------------------- #
def deeponet_kernel(x_ref, w_ref, out_ref):
    """x_ref:  [TB, 32]   batch-major fused features (branch | trunk | zeros)
    w_ref:  [384, 128] packed slab (slimmed fused weights + bias block)
    out_ref:[1, TB]    branch_out * trunk_out per batch lane."""
    compute_dtype = x_ref.dtype
    # Batch-major HBM tile -> feature-major compute tile (XLU transpose; the
    # XLU slot is otherwise idle in this kernel).
    h = x_ref[...].T                                         # [32, TB]
    for l, (r0, out_d, in_d) in enumerate(LAYER_GEOM):
        w = w_ref[r0:r0 + out_d, 0:in_d]                     # [out, in]
        b = w_ref[BIAS_ROW0:BIAS_ROW0 + out_d, l:l + 1]      # [out, 1]
        h = jnp.dot(w, h, preferred_element_type=jnp.float32)
        h = h + b.astype(jnp.float32)
        if l < NUM_LAYERS - 1:
            h = jnp.tanh(h).astype(compute_dtype)            # tanh on f32 acc
    # Final h: [8, TB] f32; row 0 = branch output, row 1 = trunk output.
    # output_size == 1, so torch's sum(dim=1) is the identity and is dropped.
    out_ref[...] = (h[0:1, :] * h[1:2, :]).astype(out_ref.dtype)


# --------------------------------------------------------------------------- #
# Parameter packing: 20 tiny tensors -> one [384, 128] slab
# --------------------------------------------------------------------------- #
def pack_params(params):
    """Slimmed block-diagonal fused weights ([out, in]) stacked on sublanes,
    plus a bias block whose column l holds the fused bias of layer l."""
    bw, bb = params["branch_w"], params["branch_b"]
    tw, tb = params["trunk_w"], params["trunk_b"]
    slab = jnp.zeros((SLAB_ROWS, LANE), jnp.float32)
    for l, (r0, _out_d, _in_d) in enumerate(LAYER_GEOM):
        ob, ib = BRANCH_DIMS[l]
        ot, it = TRUNK_DIMS[l]
        slab = slab.at[r0:r0 + ob, 0:ib].set(bw[l])                  # branch block
        slab = slab.at[r0 + ob:r0 + ob + ot, ib:ib + it].set(tw[l])  # trunk block
        slab = slab.at[BIAS_ROW0:BIAS_ROW0 + ob, l].set(bb[l])
        slab = slab.at[BIAS_ROW0 + ob:BIAS_ROW0 + ob + ot, l].set(tb[l])
    return slab


# --------------------------------------------------------------------------- #
# Wrapper
# --------------------------------------------------------------------------- #
def deeponet_forward(branch_x, trunk_x, params, *, tile_b=2048, min_tiles=1,
                     compute_dtype=jnp.float32):
    """branch_x: [B, 20], trunk_x: [B, 1]  ->  [B, 1].

    tile_b:        max batch tile (lane axis) per grid step.
    min_tiles:     force at least this many grid steps (set >= 2 on v7x so both
                   TensorCores get work via dimension_semantics=("parallel",)).
    compute_dtype: jnp.bfloat16 is the recommended fast path on v5e/v6e/v7x
                   (bf16 MXU operands, f32 accumulation + f32 tanh kept)."""
    B = branch_x.shape[0]
    assert branch_x.shape == (B, BRANCH_IN) and trunk_x.shape == (B, TRUNK_IN)
    # Kernel hard-codes output_size == 1 (multiplies rows 0/1 of the final h).
    assert OUTPUT == 1

    # Even-split, 128-aligned batch tiling: padded garbage rows < 128 per tile.
    b128 = _round_up(max(B, 1), LANE)
    max_tiles = b128 // LANE
    n_tiles = min(max(pl.cdiv(b128, tile_b), min_tiles), max_tiles)
    tb = _round_up(pl.cdiv(b128, n_tiles), LANE)
    b_pad = n_tiles * tb

    # Fused, feature-slimmed, batch-major input: single XLA fusion, no transpose.
    x = jnp.concatenate([branch_x, trunk_x], axis=1)             # [B, 21]
    x = jnp.pad(x, ((0, b_pad - B), (0, FEAT_PAD - FEAT)))       # [B_pad, 32]
    x = x.astype(compute_dtype)

    slab = pack_params(params).astype(compute_dtype)             # [384, 128]

    out = pl.pallas_call(
        deeponet_kernel,
        out_shape=jax.ShapeDtypeStruct((1, b_pad), jnp.float32),
        grid=(n_tiles,),
        in_specs=[
            pl.BlockSpec((tb, FEAT_PAD), lambda i: (i, 0)),          # input tile
            pl.BlockSpec((SLAB_ROWS, LANE), lambda i: (0, 0)),       # resident weights
        ],
        out_specs=pl.BlockSpec((1, tb), lambda i: (0, i)),           # lane-dense out
        compiler_params=pltpu.CompilerParams(
            dimension_semantics=("parallel",),
        ),
    )(x, slab)

    return out[0, :B].reshape(B, 1)


# --------------------------------------------------------------------------- #
# Init + pure-JAX reference
# --------------------------------------------------------------------------- #
def init_params(key):
    """PyTorch-style uniform(+-1/sqrt(fan_in)) init; weights stored [out, in]."""
    dims = [HIDDEN, HIDDEN // 2, HIDDEN // 4, HIDDEN // 8, OUTPUT]

    def make_net(key, in_size):
        ws, bs = [], []
        fan_in = in_size
        for out_size in dims:
            key, kw, kb = jax.random.split(key, 3)
            bound = float(1.0 / (fan_in ** 0.5))
            ws.append(jax.random.uniform(kw, (out_size, fan_in), jnp.float32,
                                         -bound, bound))
            bs.append(jax.random.uniform(kb, (out_size,), jnp.float32,
                                         -bound, bound))
            fan_in = out_size
        return ws, bs, key

    bw, bb, key = make_net(key, BRANCH_IN)
    tw, tb, key = make_net(key, TRUNK_IN)
    return {"branch_w": bw, "branch_b": bb, "trunk_w": tw, "trunk_b": tb}


def reference_forward(branch_x, trunk_x, params):
    def mlp(x, ws, bs):
        h = x
        for i in range(NUM_LAYERS - 1):
            h = jnp.tanh(h @ ws[i].T + bs[i])
        return h @ ws[-1].T + bs[-1]

    b = mlp(branch_x, params["branch_w"], params["branch_b"])
    t = mlp(trunk_x, params["trunk_w"], params["trunk_b"])
    return jnp.sum(b * t, axis=1, keepdims=True)


if __name__ == "__main__":
    key = jax.random.PRNGKey(0)
    key, k1, k2 = jax.random.split(key, 3)

    B = 8
    branch_x = jax.random.normal(k1, (B, BRANCH_IN), jnp.float32)
    trunk_x = jax.random.normal(k2, (B, TRUNK_IN), jnp.float32)

    params = init_params(key)
    ref = reference_forward(branch_x, trunk_x, params)

    # f32 path (default): strict check against the pure-JAX reference.
    out = jax.block_until_ready(deeponet_forward(branch_x, trunk_x, params))
    assert out.shape == (B, 1), out.shape
    assert jnp.allclose(out, ref, atol=1e-4, rtol=1e-4), (out, ref)

    # bf16 fast path (recommended on v5e/v6e/v7x): loose tolerance only.
    out_bf16 = jax.block_until_ready(
        deeponet_forward(branch_x, trunk_x, params, compute_dtype=jnp.bfloat16))
    assert out_bf16.shape == (B, 1), out_bf16.shape
    assert jnp.allclose(out_bf16, ref, atol=5e-2, rtol=5e-2), (out_bf16, ref)

    print("KERNEL_OK")
</pallas_src>

<mosaic_0001>
module attributes {stable_mosaic.version = 11 : i64} {
  func.func @deeponet_kernel(%arg0: i32, %arg1: memref<128x32xf32, #tpu.memory_space<vmem>>, %arg2: memref<384x128xf32, #tpu.memory_space<vmem>>, %arg3: memref<1x128xf32, #tpu.memory_space<vmem>>) attributes {dimension_semantics = [#tpu.dimension_semantics<parallel>], iteration_bounds = array<i64: 1>, scalar_prefetch = 0 : i64, scratch_operands = 0 : i64, tpu.core_type = #tpu.core_type<tc>, window_params = [{transform_indices = @transform_0, window_bounds = array<i64: 128, 32>}, {pipeline_mode = #tpu.pipeline_mode<synchronous>, transform_indices = @transform_1, window_bounds = array<i64: 384, 128>}, {transform_indices = @transform_2, window_bounds = array<i64: 1, 128>}]} {
    %c0 = arith.constant 0 : index
    %c0_0 = arith.constant 0 : index
    %0 = vector.load %arg1[%c0, %c0_0] : memref<128x32xf32, #tpu.memory_space<vmem>>, vector<128x32xf32>
    %1 = tpu.transpose %0, [1, 0] : vector<128x32xf32> -> vector<32x128xf32>
    %c0_1 = arith.constant 0 : index
    %c0_2 = arith.constant 0 : index
    %2 = vector.load %arg2[%c0_1, %c0_2] : memref<384x128xf32, #tpu.memory_space<vmem>>, vector<128x32xf32>
    %c248 = arith.constant 248 : index
    %c0_3 = arith.constant 0 : index
    %3 = vector.load %arg2[%c248, %c0_3] : memref<384x128xf32, #tpu.memory_space<vmem>>, vector<128x1xf32>
    %cst = arith.constant dense<0.000000e+00> : vector<128x128xf32>
    %4 = tpu.matmul %2, %1, %cst {dimension_numbers = #tpu.dot_dimension_numbers<[1], [0], [0], [1], [0, 0, 1, 1], [], []>} : vector<128x32xf32>, vector<32x128xf32>, vector<128x128xf32> -> vector<128x128xf32>
    %5 = vector.broadcast %3 : vector<128x1xf32> to vector<128x128xf32>
    %6 = arith.addf %4, %5 : vector<128x128xf32>
    %7 = math.tanh %6 : vector<128x128xf32>
    %c128 = arith.constant 128 : index
    %c0_4 = arith.constant 0 : index
    %8 = vector.load %arg2[%c128, %c0_4] : memref<384x128xf32, #tpu.memory_space<vmem>>, vector<64x128xf32>
    %c248_5 = arith.constant 248 : index
    %c1 = arith.constant 1 : index
    %9 = vector.load %arg2[%c248_5, %c1] : memref<384x128xf32, #tpu.memory_space<vmem>>, vector<64x1xf32>
    %cst_6 = arith.constant dense<0.000000e+00> : vector<64x128xf32>
    %10 = tpu.matmul %8, %7, %cst_6 {dimension_numbers = #tpu.dot_dimension_numbers<[1], [0], [0], [1], [0, 0, 1, 1], [], []>} : vector<64x128xf32>, vector<128x128xf32>, vector<64x128xf32> -> vector<64x128xf32>
    %11 = vector.broadcast %9 : vector<64x1xf32> to vector<64x128xf32>
    %12 = arith.addf %10, %11 : vector<64x128xf32>
    %13 = math.tanh %12 : vector<64x128xf32>
    %c192 = arith.constant 192 : index
    %c0_7 = arith.constant 0 : index
    %14 = vector.load %arg2[%c192, %c0_7] : memref<384x128xf32, #tpu.memory_space<vmem>>, vector<32x64xf32>
    %c248_8 = arith.constant 248 : index
    %c2 = arith.constant 2 : index
    %15 = vector.load %arg2[%c248_8, %c2] : memref<384x128xf32, #tpu.memory_space<vmem>>, vector<32x1xf32>
    %cst_9 = arith.constant dense<0.000000e+00> : vector<32x128xf32>
    %16 = tpu.matmul %14, %13, %cst_9 {dimension_numbers = #tpu.dot_dimension_numbers<[1], [0], [0], [1], [0, 0, 1, 1], [], []>} : vector<32x64xf32>, vector<64x128xf32>, vector<32x128xf32> -> vector<32x128xf32>
    %17 = vector.broadcast %15 : vector<32x1xf32> to vector<32x128xf32>
    %18 = arith.addf %16, %17 : vector<32x128xf32>
    %19 = math.tanh %18 : vector<32x128xf32>
    %c224 = arith.constant 224 : index
    %c0_10 = arith.constant 0 : index
    %20 = vector.load %arg2[%c224, %c0_10] : memref<384x128xf32, #tpu.memory_space<vmem>>, vector<16x32xf32>
    %c248_11 = arith.constant 248 : index
    %c3 = arith.constant 3 : index
    %21 = vector.load %arg2[%c248_11, %c3] : memref<384x128xf32, #tpu.memory_space<vmem>>, vector<16x1xf32>
    %cst_12 = arith.constant dense<0.000000e+00> : vector<16x128xf32>
    %22 = tpu.matmul %20, %19, %cst_12 {dimension_numbers = #tpu.dot_dimension_numbers<[1], [0], [0], [1], [0, 0, 1, 1], [], []>} : vector<16x32xf32>, vector<32x128xf32>, vector<16x128xf32> -> vector<16x128xf32>
    %23 = vector.broadcast %21 : vector<16x1xf32> to vector<16x128xf32>
    %24 = arith.addf %22, %23 : vector<16x128xf32>
    %25 = math.tanh %24 : vector<16x128xf32>
    %c240 = arith.constant 240 : index
    %c0_13 = arith.constant 0 : index
    %26 = vector.load %arg2[%c240, %c0_13] : memref<384x128xf32, #tpu.memory_space<vmem>>, vector<8x16xf32>
    %c248_14 = arith.constant 248 : index
    %c4 = arith.constant 4 : index
    %27 = vector.load %arg2[%c248_14, %c4] : memref<384x128xf32, #tpu.memory_space<vmem>>, vector<8x1xf32>
    %cst_15 = arith.constant dense<0.000000e+00> : vector<8x128xf32>
    %28 = tpu.matmul %26, %25, %cst_15 {dimension_numbers = #tpu.dot_dimension_numbers<[1], [0], [0], [1], [0, 0, 1, 1], [], []>} : vector<8x16xf32>, vector<16x128xf32>, vector<8x128xf32> -> vector<8x128xf32>
    %29 = vector.broadcast %27 : vector<8x1xf32> to vector<8x128xf32>
    %30 = arith.addf %28, %29 : vector<8x128xf32>
    %31 = vector.extract_strided_slice %30 {offsets = [0, 0], sizes = [1, 128], strides = [1, 1]} : vector<8x128xf32> to vector<1x128xf32>
    %32 = vector.extract_strided_slice %30 {offsets = [1, 0], sizes = [1, 128], strides = [1, 1]} : vector<8x128xf32> to vector<1x128xf32>
    %33 = arith.mulf %31, %32 : vector<1x128xf32>
    %c0_16 = arith.constant 0 : index
    %c0_17 = arith.constant 0 : index
    %34 = vector.load %arg3[%c0_16, %c0_17] : memref<1x128xf32, #tpu.memory_space<vmem>>, vector<1x128xf32>
    tpu.vector_store %arg3[%c0_16, %c0_17], %33 {strides = array<i32>} : memref<1x128xf32, #tpu.memory_space<vmem>>, vector<1x128xf32>,
    return
  }
  func.func @transform_0(%arg0: i32) -> (i32, i32) {
    %c0_i32 = arith.constant 0 : i32
    %c0_i32_0 = arith.constant 0 : i32
    return %arg0, %c0_i32 : i32, i32
  }
  func.func @transform_1(%arg0: i32) -> (i32, i32) {
    %c0_i32 = arith.constant 0 : i32
    %c0_i32_0 = arith.constant 0 : i32
    %c0_i32_1 = arith.constant 0 : i32
    return %c0_i32, %c0_i32_0 : i32, i32
  }
  func.func @transform_2(%arg0: i32) -> (i32, i32) {
    %c0_i32 = arith.constant 0 : i32
    %c0_i32_0 = arith.constant 0 : i32
    return %c0_i32, %arg0 : i32, i32
  }
}

</mosaic_0001>

<llo_original>
// kernel: tpu_custom_call.1
$region0: #{tpu_custom_call.1}
  #allocation0 [shape = 'u32[]', space=smem, size = 0x4, offset = 0x4, fixed_abs, tag = 'smem constant byte address 0x4 - core index']
  #allocation1 [shape = 'u32[144,128]{1,0:T(1,128)}', space=vmem, size = 0x12000, scoped, tag = 'internal scratch']
  %s0 = inlined_call_operand.vmem [shape: f32[128,32], index: 0, kind: input, shape index: {}]
  %s1 = inlined_call_operand.hbm [shape: f32[384,128], index: 1, kind: input, shape index: {}]
  %s2 = inlined_call_operand.hbm [shape: f32[1,128], index: 2, kind: output, shape index: {}]
  %s3 = sld [smem:[#allocation0]]
  $region22: #{tpu_custom_call.1} parent=0
    _
  %s5 = ssub.s32 1, %s3
  %s6 = scalar_select 0, %s5, %s3
  $region1: #{tpu_custom_call.1} parent=0
    #allocation2 [shape = 'u8[196608]{0}', space=vmem, size = 0x30000, scoped, tag = 'input window, operand 1, single buffered']
    #allocation3 [shape = 's32[1]{0}', space=sflag, size = 0x4, scoped, tag = 'scoped memory for tpu_custom_call.1']
    #allocation4 [shape = 's32[1]{0}', space=sflag, size = 0x4, scoped, tag = 'scoped memory for tpu_custom_call.1']
    #allocation5 [shape = 'u8[512]{0}', space=vmem, size = 0x400, scoped, tag = 'output window, operand 0, single buffered']
    %7 = vsyncpa [#allocation3], 0
    %8 = vsyncpa [#allocation4], 0
    // Predicated region
    $region2: #{tpu_custom_call.1} parent=1 // pred_check
      _
    $region3: #{tpu_custom_call.1} parent=1 // pred_check_branch
      %10 = sbr.rel (0) target = $region5
    $region4: #{tpu_custom_call.1} parent=1 // pred_region
      _
    $region5: #{tpu_custom_call.1} parent=1 // pred_fallthru
      _
    // Predicated region
    $region6: #{tpu_custom_call.1} parent=1 // pred_check
      _
    $region7: #{tpu_custom_call.1} parent=1 // pred_check_branch
      %12 = sbr.rel (0) target = $region9
    $region8: #{tpu_custom_call.1} parent=1 // pred_region
      %s14 = ssub.s32 6144, 6144
      %15 = vsyncadd [#allocation3], %s14
      %s16 = sshll.u32 [#allocation2], 4
      %s17 = int_to_ptr.vmem [resolvable:$true] %s16
      %22 = dma.hbm_to_vmem [thread:$0]  %s1, 6144, %s17, [#allocation3], 128, 128, 8
    $region9: #{tpu_custom_call.1} parent=1 // pred_fallthru
      _
    // Predicated region
    $region10: #{tpu_custom_call.1} parent=1 // pred_check
      _
    $region11: #{tpu_custom_call.1} parent=1 // pred_check_branch
      %24 = sbr.rel (0) target = $region13
    $region12: #{tpu_custom_call.1} parent=1 // pred_region
      %25 = dma.done [#allocation3], 6144
    $region13: #{tpu_custom_call.1} parent=1 // pred_fallthru
      _
    %v26 = vld [vmem:[%s0] sm:$0xff]
    %v27 = vld [vmem:[%s0 + $0x8] sm:$0xff]
    %v28 = vld [vmem:[%s0 + $0x10] sm:$0xff]
    %v29 = vld [vmem:[%s0 + $0x18] sm:$0xff]
    %v30 = vld [vmem:[%s0 + $0x20] sm:$0xff]
    %v31 = vld [vmem:[%s0 + $0x28] sm:$0xff]
    %v32 = vld [vmem:[%s0 + $0x30] sm:$0xff]
    %v33 = vld [vmem:[%s0 + $0x38] sm:$0xff]
    %v34 = vld [vmem:[%s0 + $0x40] sm:$0xff]
    %v35 = vld [vmem:[%s0 + $0x48] sm:$0xff]
    %v36 = vld [vmem:[%s0 + $0x50] sm:$0xff]
    %v37 = vld [vmem:[%s0 + $0x58] sm:$0xff]
    %v38 = vld [vmem:[%s0 + $0x60] sm:$0xff]
    %v39 = vld [vmem:[%s0 + $0x68] sm:$0xff]
    %v40 = vld [vmem:[%s0 + $0x70] sm:$0xff]
    %v41 = vld [vmem:[%s0 + $0x78] sm:$0xff]
    %v42 = vld [vmem:[#allocation2] sm:$0xff]
    %v43 = vld [vmem:[#allocation2 + $0x8] sm:$0xff]
    %v44 = vld [vmem:[#allocation2 + $0x10] sm:$0xff]
    %v45 = vld [vmem:[#allocation2 + $0x18] sm:$0xff]
    %v46 = vld [vmem:[#allocation2 + $0x20] sm:$0xff]
    %v47 = vld [vmem:[#allocation2 + $0x28] sm:$0xff]
    %v48 = vld [vmem:[#allocation2 + $0x30] sm:$0xff]
    %v49 = vld [vmem:[#allocation2 + $0x38] sm:$0xff]
    %v50 = vld [vmem:[#allocation2 + $0x40] sm:$0xff]
    %v51 = vld [vmem:[#allocation2 + $0x48] sm:$0xff]
    %v52 = vld [vmem:[#allocation2 + $0x50] sm:$0xff]
    %v53 = vld [vmem:[#allocation2 + $0x58] sm:$0xff]
    %v54 = vld [vmem:[#allocation2 + $0x60] sm:$0xff]
    %v55 = vld [vmem:[#allocation2 + $0x68] sm:$0xff]
    %v56 = vld [vmem:[#allocation2 + $0x70] sm:$0xff]
    %v57 = vld [vmem:[#allocation2 + $0x78] sm:$0xff]
    %v58 = vld [vmem:[#allocation2 + $0xf8] sm:$0xff]
    %v59 = vld [vmem:[#allocation2 + $0x100] sm:$0xff]
    %v60 = vld [vmem:[#allocation2 + $0x108] sm:$0xff]
    %v61 = vld [vmem:[#allocation2 + $0x110] sm:$0xff]
    %v62 = vld [vmem:[#allocation2 + $0x118] sm:$0xff]
    %v63 = vld [vmem:[#allocation2 + $0x120] sm:$0xff]
    %v64 = vld [vmem:[#allocation2 + $0x128] sm:$0xff]
    %v65 = vld [vmem:[#allocation2 + $0x130] sm:$0xff]
    %v66 = vld [vmem:[#allocation2 + $0x138] sm:$0xff]
    %v67 = vld [vmem:[#allocation2 + $0x140] sm:$0xff]
    %v68 = vld [vmem:[#allocation2 + $0x148] sm:$0xff]
    %v69 = vld [vmem:[#allocation2 + $0x150] sm:$0xff]
    %v70 = vld [vmem:[#allocation2 + $0x158] sm:$0xff]
    %v71 = vld [vmem:[#allocation2 + $0x160] sm:$0xff]
    %v72 = vld [vmem:[#allocation2 + $0x168] sm:$0xff]
    %v73 = vld [vmem:[#allocation2 + $0x170] sm:$0xff]
    %75 = vset.pattern.permute.xlu0 0
    %76 = vperm.xlu0 %75, %v58
    %v77 = vpop.permute.xlu0 %76
    %80 = vset.pattern.permute.xlu0 0
    %81 = vperm.xlu0 %80, %v59
    %v82 = vpop.permute.xlu0 %81
    %85 = vset.pattern.permute.xlu0 0
    %86 = vperm.xlu0 %85, %v60
    %v87 = vpop.permute.xlu0 %86
    %90 = vset.pattern.permute.xlu0 0
    %91 = vperm.xlu0 %90, %v61
    %v92 = vpop.permute.xlu0 %91
    %95 = vset.pattern.permute.xlu0 0
    %96 = vperm.xlu0 %95, %v62
    %v97 = vpop.permute.xlu0 %96
    %100 = vset.pattern.permute.xlu0 0
    %101 = vperm.xlu0 %100, %v63
    %v102 = vpop.permute.xlu0 %101
    %105 = vset.pattern.permute.xlu0 0
    %106 = vperm.xlu0 %105, %v64
    %v107 = vpop.permute.xlu0 %106
    %110 = vset.pattern.permute.xlu0 0
    %111 = vperm.xlu0 %110, %v65
    %v112 = vpop.permute.xlu0 %111
    %115 = vset.pattern.permute.xlu0 0
    %116 = vperm.xlu0 %115, %v66
    %v117 = vpop.permute.xlu0 %116
    %120 = vset.pattern.permute.xlu0 0
    %121 = vperm.xlu0 %120, %v67
    %v122 = vpop.permute.xlu0 %121
    %125 = vset.pattern.permute.xlu0 0
    %126 = vperm.xlu0 %125, %v68
    %v127 = vpop.permute.xlu0 %126
    %130 = vset.pattern.permute.xlu0 0
    %131 = vperm.xlu0 %130, %v69
    %v132 = vpop.permute.xlu0 %131
    %135 = vset.pattern.permute.xlu0 0
    %136 = vperm.xlu0 %135, %v70
    %v137 = vpop.permute.xlu0 %136
    %140 = vset.pattern.permute.xlu0 0
    %141 = vperm.xlu0 %140, %v71
    %v142 = vpop.permute.xlu0 %141
    %145 = vset.pattern.permute.xlu0 0
    %146 = vperm.xlu0 %145, %v72
    %v147 = vpop.permute.xlu0 %146
    %150 = vset.pattern.permute.xlu0 0
    %151 = vperm.xlu0 %150, %v73
    %v152 = vpop.permute.xlu0 %151
    %vm154 = vcmask 261120
    %v156 = vsel %vm154, %v42, 0
    %v159 = vsel %vm154, %v43, 0
    %v162 = vsel %vm154, %v44, 0
    %v165 = vsel %vm154, %v45, 0
    %v168 = vsel %vm154, %v46, 0
    %v171 = vsel %vm154, %v47, 0
    %v174 = vsel %vm154, %v48, 0
    %v177 = vsel %vm154, %v49, 0
    %v180 = vsel %vm154, %v50, 0
    %v183 = vsel %vm154, %v51, 0
    %v186 = vsel %vm154, %v52, 0
    %v189 = vsel %vm154, %v53, 0
    %v192 = vsel %vm154, %v54, 0
    %v195 = vsel %vm154, %v55, 0
    %v198 = vsel %vm154, %v56, 0
    %v201 = vsel %vm154, %v57, 0
    %v204 = vsel %vm154, %v26, 0
    %v207 = vsel %vm154, %v27, 0
    %v210 = vsel %vm154, %v28, 0
    %v213 = vsel %vm154, %v29, 0
    %v216 = vsel %vm154, %v30, 0
    %v219 = vsel %vm154, %v31, 0
    %v222 = vsel %vm154, %v32, 0
    %v225 = vsel %vm154, %v33, 0
    %v228 = vsel %vm154, %v34, 0
    %v231 = vsel %vm154, %v35, 0
    %v234 = vsel %vm154, %v36, 0
    %v237 = vsel %vm154, %v37, 0
    %v240 = vsel %vm154, %v38, 0
    %v243 = vsel %vm154, %v39, 0
    %v246 = vsel %vm154, %v40, 0
    %v249 = vsel %vm154, %v41, 0
    %251 = vmatprep.subr.mxu0 0.0
    %252 = vmatpush1.xpose.msra.mxu0 %v249
    %253 = vmatprep.subr.mxu0 0.0
    %254 = vmatpush1.xpose.msra.mxu0 %v246
    %255 = vmatprep.subr.mxu0 0.0
    %256 = vmatpush1.xpose.msra.mxu0 %v243
    %257 = vmatprep.subr.mxu0 0.0
    %258 = vmatpush1.xpose.msra.mxu0 %v240
    %259 = vmatprep.subr.mxu0 0.0
    %260 = vmatpush1.xpose.msra.mxu0 %v237
    %261 = vmatprep.subr.mxu0 0.0
    %262 = vmatpush1.xpose.msra.mxu0 %v234
    %263 = vmatprep.subr.mxu0 0.0
    %264 = vmatpush1.xpose.msra.mxu0 %v231
    %265 = vmatprep.subr.mxu0 0.0
    %266 = vmatpush1.xpose.msra.mxu0 %v228
    %267 = vmatprep.subr.mxu0 0.0
    %268 = vmatpush1.xpose.msra.mxu0 %v225
    %269 = vmatprep.subr.mxu0 0.0
    %270 = vmatpush1.xpose.msra.mxu0 %v222
    %271 = vmatprep.subr.mxu0 0.0
    %272 = vmatpush1.xpose.msra.mxu0 %v219
    %273 = vmatprep.subr.mxu0 0.0
    %274 = vmatpush1.xpose.msra.mxu0 %v216
    %275 = vmatprep.subr.mxu0 0.0
    %276 = vmatpush1.xpose.msra.mxu0 %v213
    %277 = vmatprep.subr.mxu0 0.0
    %278 = vmatpush1.xpose.msra.mxu0 %v210
    %279 = vmatprep.subr.mxu0 0.0
    %280 = vmatpush1.xpose.msra.mxu0 %v207
    %281 = vmatprep.subr.mxu0 0.0
    %282 = vmatpush1.xpose.msra.mxu0 %v204
    %283 = vmatprep.subr.mxu0 0.0
    %284 = vmatpush2.xpose.msra.mxu0 0.0
    %285 = vmatprep.subr.mxu0 0.0
    %286 = vmatpush2.xpose.msra.mxu0 0.0
    %287 = vmatprep.subr.mxu0 0.0
    %288 = vmatpush2.xpose.msra.mxu0 0.0
    %289 = vmatprep.subr.mxu0 0.0
    %290 = vmatpush2.xpose.msra.mxu0 0.0
    %291 = vmatprep.subr.mxu0 0.0
    %292 = vmatpush2.xpose.msra.mxu0 0.0
    %293 = vmatprep.subr.mxu0 0.0
    %294 = vmatpush2.xpose.msra.mxu0 0.0
    %295 = vmatprep.subr.mxu0 0.0
    %296 = vmatpush2.xpose.msra.mxu0 0.0
    %297 = vmatprep.subr.mxu0 0.0
    %298 = vmatpush2.xpose.msra.mxu0 0.0
    %299 = vmatprep.subr.mxu0 0.0
    %300 = vmatpush2.xpose.msra.mxu0 0.0
    %301 = vmatprep.subr.mxu0 0.0
    %302 = vmatpush2.xpose.msra.mxu0 0.0
    %303 = vmatprep.subr.mxu0 0.0
    %304 = vmatpush2.xpose.msra.mxu0 0.0
    %305 = vmatprep.subr.mxu0 0.0
    %306 = vmatpush2.xpose.msra.mxu0 0.0
    %307 = vmatprep.subr.mxu0 0.0
    %308 = vmatpush2.xpose.msra.mxu0 0.0
    %309 = vmatprep.subr.mxu0 0.0
    %310 = vmatpush2.xpose.msra.mxu0 0.0
    %311 = vmatprep.subr.mxu0 0.0
    %312 = vmatpush2.xpose.msra.mxu0 0.0
    %313 = vmatprep.subr.mxu0 0.0
    %314 = vmatpush2.xpose.msra.mxu0 0.0
    %315 = vmatprep.mubr.f32.mxu0 0.0
    %316 = vmatmul.mubr.f32.gmra.mxu0 %v156
    %v317 = vpop.f32.mrf.mxu0
    %v318 = vadd.f32 %v77, %v317
    %v319 = vpop.f32.mrf.mxu0
    %320 = vmatprep.mubr.f32.mxu0 0.0
    %321 = vmatmul.mubr.f32.gmra.mxu0 %v159
    %v322 = vpop.f32.mrf.mxu0
    %v323 = vadd.f32 %v82, %v322
    %v324 = vpop.f32.mrf.mxu0
    %325 = vmatprep.mubr.f32.mxu0 0.0
    %326 = vmatmul.mubr.f32.gmra.mxu0 %v162
    %v327 = vpop.f32.mrf.mxu0
    %v328 = vadd.f32 %v87, %v327
    %v329 = vpop.f32.mrf.mxu0
    %330 = vmatprep.mubr.f32.mxu0 0.0
    %331 = vmatmul.mubr.f32.gmra.mxu0 %v165
    %v332 = vpop.f32.mrf.mxu0
    %v333 = vadd.f32 %v92, %v332
    %v334 = vpop.f32.mrf.mxu0
    %335 = vmatprep.mubr.f32.mxu0 0.0
    %336 = vmatmul.mubr.f32.gmra.mxu0 %v168
    %v337 = vpop.f32.mrf.mxu0
    %v338 = vadd.f32 %v97, %v337
    %v339 = vpop.f32.mrf.mxu0
    %340 = vmatprep.mubr.f32.mxu0 0.0
    %341 = vmatmul.mubr.f32.gmra.mxu0 %v171
    %v342 = vpop.f32.mrf.mxu0
    %v343 = vadd.f32 %v102, %v342
    %v344 = vpop.f32.mrf.mxu0
    %345 = vmatprep.mubr.f32.mxu0 0.0
    %346 = vmatmul.mubr.f32.gmra.mxu0 %v174
    %v347 = vpop.f32.mrf.mxu0
    %v348 = vadd.f32 %v107, %v347
    %v349 = vpop.f32.mrf.mxu0
    %350 = vmatprep.mubr.f32.mxu0 0.0
    %351 = vmatmul.mubr.f32.gmra.mxu0 %v177
    %v352 = vpop.f32.mrf.mxu0
    %v353 = vadd.f32 %v112, %v352
    %v354 = vpop.f32.mrf.mxu0
    %355 = vmatprep.mubr.f32.mxu0 0.0
    %356 = vmatmul.mubr.f32.gmra.mxu0 %v180
    %v357 = vpop.f32.mrf.mxu0
    %v358 = vadd.f32 %v117, %v357
    %v359 = vpop.f32.mrf.mxu0
    %360 = vmatprep.mubr.f32.mxu0 0.0
    %361 = vmatmul.mubr.f32.gmra.mxu0 %v183
    %v362 = vpop.f32.mrf.mxu0
    %v363 = vadd.f32 %v122, %v362
    %v364 = vpop.f32.mrf.mxu0
    %365 = vmatprep.mubr.f32.mxu0 0.0
    %366 = vmatmul.mubr.f32.gmra.mxu0 %v186
    %v367 = vpop.f32.mrf.mxu0
    %v368 = vadd.f32 %v127, %v367
    %v369 = vpop.f32.mrf.mxu0
    %370 = vmatprep.mubr.f32.mxu0 0.0
    %371 = vmatmul.mubr.f32.gmra.mxu0 %v189
    %v372 = vpop.f32.mrf.mxu0
    %v373 = vadd.f32 %v132, %v372
    %v374 = vpop.f32.mrf.mxu0
    %375 = vmatprep.mubr.f32.mxu0 0.0
    %376 = vmatmul.mubr.f32.gmra.mxu0 %v192
    %v377 = vpop.f32.mrf.mxu0
    %v378 = vadd.f32 %v137, %v377
    %v379 = vpop.f32.mrf.mxu0
    %380 = vmatprep.mubr.f32.mxu0 0.0
    %381 = vmatmul.mubr.f32.gmra.mxu0 %v195
    %v382 = vpop.f32.mrf.mxu0
    %v383 = vadd.f32 %v142, %v382
    %v384 = vpop.f32.mrf.mxu0
    %385 = vmatprep.mubr.f32.mxu0 0.0
    %386 = vmatmul.mubr.f32.gmra.mxu0 %v198
    %v387 = vpop.f32.mrf.mxu0
    %v388 = vadd.f32 %v147, %v387
    %v389 = vpop.f32.mrf.mxu0
    %390 = vmatprep.mubr.f32.mxu0 0.0
    %391 = vmatmul.mubr.f32.gmra.mxu0 %v201
    %v392 = vpop.f32.mrf.mxu0
    %v393 = vadd.f32 %v152, %v392
    %v394 = vpop.f32.mrf.mxu0
    %395 = vdwg.mxu0
    %v396 = vtanh.pop %v318
    %v397 = vtanh.pop %v323
    %v398 = vtanh.pop %v328
    %v399 = vtanh.pop %v333
    %v400 = vtanh.pop %v338
    %v401 = vtanh.pop %v343
    %v402 = vtanh.pop %v348
    %v403 = vtanh.pop %v353
    %v404 = vtanh.pop %v358
    %v405 = vtanh.pop %v363
    %v406 = vtanh.pop %v368
    %v407 = vtanh.pop %v373
    %v408 = vtanh.pop %v378
    %v409 = vtanh.pop %v383
    %v410 = vtanh.pop %v388
    %v411 = vtanh.pop %v393
    %v412 = vld [vmem:[#allocation2 + $0x80] sm:$0xff]
    %v413 = vld [vmem:[#allocation2 + $0x88] sm:$0xff]
    %v414 = vld [vmem:[#allocation2 + $0x90] sm:$0xff]
    %v415 = vld [vmem:[#allocation2 + $0x98] sm:$0xff]
    %v416 = vld [vmem:[#allocation2 + $0xa0] sm:$0xff]
    %v417 = vld [vmem:[#allocation2 + $0xa8] sm:$0xff]
    %v418 = vld [vmem:[#allocation2 + $0xb0] sm:$0xff]
    %v419 = vld [vmem:[#allocation2 + $0xb8] sm:$0xff]
    %v420 = vld [vmem:[#allocation2 + $0xf8] sm:$0xff]
    %v421 = vld [vmem:[#allocation2 + $0x100] sm:$0xff]
    %v422 = vld [vmem:[#allocation2 + $0x108] sm:$0xff]
    %v423 = vld [vmem:[#allocation2 + $0x110] sm:$0xff]
    %v424 = vld [vmem:[#allocation2 + $0x118] sm:$0xff]
    %v425 = vld [vmem:[#allocation2 + $0x120] sm:$0xff]
    %v426 = vld [vmem:[#allocation2 + $0x128] sm:$0xff]
    %v427 = vld [vmem:[#allocation2 + $0x130] sm:$0xff]
    %429 = vset.pattern.permute.xlu0 1
    %430 = vperm.xlu0 %429, %v420
    %v431 = vpop.permute.xlu0 %430
    %434 = vset.pattern.permute.xlu0 1
    %435 = vperm.xlu0 %434, %v421
    %v436 = vpop.permute.xlu0 %435
    %439 = vset.pattern.permute.xlu0 1
    %440 = vperm.xlu0 %439, %v422
    %v441 = vpop.permute.xlu0 %440
    %444 = vset.pattern.permute.xlu0 1
    %445 = vperm.xlu0 %444, %v423
    %v446 = vpop.permute.xlu0 %445
    %449 = vset.pattern.permute.xlu0 1
    %450 = vperm.xlu0 %449, %v424
    %v451 = vpop.permute.xlu0 %450
    %454 = vset.pattern.permute.xlu0 1
    %455 = vperm.xlu0 %454, %v425
    %v456 = vpop.permute.xlu0 %455
    %459 = vset.pattern.permute.xlu0 1
    %460 = vperm.xlu0 %459, %v426
    %v461 = vpop.permute.xlu0 %460
    %464 = vset.pattern.permute.xlu0 1
    %465 = vperm.xlu0 %464, %v427
    %v466 = vpop.permute.xlu0 %465
    %468 = vmatprep.subr.mxu0 0.0
    %469 = vmatpush1.msra.mxu0 %v411
    %470 = vmatprep.subr.mxu0 0.0
    %471 = vmatpush1.msra.mxu0 %v410
    %472 = vmatprep.subr.mxu0 0.0
    %473 = vmatpush1.msra.mxu0 %v409
    %474 = vmatprep.subr.mxu0 0.0
    %475 = vmatpush1.msra.mxu0 %v408
    %476 = vmatprep.subr.mxu0 0.0
    %477 = vmatpush1.msra.mxu0 %v407
    %478 = vmatprep.subr.mxu0 0.0
    %479 = vmatpush1.msra.mxu0 %v406
    %480 = vmatprep.subr.mxu0 0.0
    %481 = vmatpush1.msra.mxu0 %v405
    %482 = vmatprep.subr.mxu0 0.0
    %483 = vmatpush1.msra.mxu0 %v404
    %484 = vmatprep.subr.mxu0 0.0
    %485 = vmatpush1.msra.mxu0 %v403
    %486 = vmatprep.subr.mxu0 0.0
    %487 = vmatpush1.msra.mxu0 %v402
    %488 = vmatprep.subr.mxu0 0.0
    %489 = vmatpush1.msra.mxu0 %v401
    %490 = vmatprep.subr.mxu0 0.0
    %491 = vmatpush1.msra.mxu0 %v400
    %492 = vmatprep.subr.mxu0 0.0
    %493 = vmatpush1.msra.mxu0 %v399
    %494 = vmatprep.subr.mxu0 0.0
    %495 = vmatpush1.msra.mxu0 %v398
    %496 = vmatprep.subr.mxu0 0.0
    %497 = vmatpush1.msra.mxu0 %v397
    %498 = vmatprep.subr.mxu0 0.0
    %499 = vmatpush1.msra.mxu0 %v396
    %500 = vmatprep.subr.mxu0 0.0
    %501 = vmatpush2.msra.mxu0 0.0
    %502 = vmatprep.subr.mxu0 0.0
    %503 = vmatpush2.msra.mxu0 0.0
    %504 = vmatprep.subr.mxu0 0.0
    %505 = vmatpush2.msra.mxu0 0.0
    %506 = vmatprep.subr.mxu0 0.0
    %507 = vmatpush2.msra.mxu0 0.0
    %508 = vmatprep.subr.mxu0 0.0
    %509 = vmatpush2.msra.mxu0 0.0
    %510 = vmatprep.subr.mxu0 0.0
    %511 = vmatpush2.msra.mxu0 0.0
    %512 = vmatprep.subr.mxu0 0.0
    %513 = vmatpush2.msra.mxu0 0.0
    %514 = vmatprep.subr.mxu0 0.0
    %515 = vmatpush2.msra.mxu0 0.0
    %516 = vmatprep.subr.mxu0 0.0
    %517 = vmatpush2.msra.mxu0 0.0
    %518 = vmatprep.subr.mxu0 0.0
    %519 = vmatpush2.msra.mxu0 0.0
    %520 = vmatprep.subr.mxu0 0.0
    %521 = vmatpush2.msra.mxu0 0.0
    %522 = vmatprep.subr.mxu0 0.0
    %523 = vmatpush2.msra.mxu0 0.0
    %524 = vmatprep.subr.mxu0 0.0
    %525 = vmatpush2.msra.mxu0 0.0
    %526 = vmatprep.subr.mxu0 0.0
    %527 = vmatpush2.msra.mxu0 0.0
    %528 = vmatprep.subr.mxu0 0.0
    %529 = vmatpush2.msra.mxu0 0.0
    %530 = vmatprep.subr.mxu0 0.0
    %531 = vmatpush2.msra.mxu0 0.0
    %532 = vmatprep.mubr.f32.mxu0 0.0
    %533 = vmatmul.mubr.f32.gmra.mxu0 %v412
    %v534 = vpop.f32.mrf.mxu0
    %v535 = vadd.f32 %v431, %v534
    %v536 = vpop.f32.mrf.mxu0
    %537 = vmatprep.mubr.f32.mxu0 0.0
    %538 = vmatmul.mubr.f32.gmra.mxu0 %v413
    %v539 = vpop.f32.mrf.mxu0
    %v540 = vadd.f32 %v436, %v539
    %v541 = vpop.f32.mrf.mxu0
    %542 = vmatprep.mubr.f32.mxu0 0.0
    %543 = vmatmul.mubr.f32.gmra.mxu0 %v414
    %v544 = vpop.f32.mrf.mxu0
    %v545 = vadd.f32 %v441, %v544
    %v546 = vpop.f32.mrf.mxu0
    %547 = vmatprep.mubr.f32.mxu0 0.0
    %548 = vmatmul.mubr.f32.gmra.mxu0 %v415
    %v549 = vpop.f32.mrf.mxu0
    %v550 = vadd.f32 %v446, %v549
    %v551 = vpop.f32.mrf.mxu0
    %552 = vmatprep.mubr.f32.mxu0 0.0
    %553 = vmatmul.mubr.f32.gmra.mxu0 %v416
    %v554 = vpop.f32.mrf.mxu0
    %v555 = vadd.f32 %v451, %v554
    %v556 = vpop.f32.mrf.mxu0
    %557 = vmatprep.mubr.f32.mxu0 0.0
    %558 = vmatmul.mubr.f32.gmra.mxu0 %v417
    %v559 = vpop.f32.mrf.mxu0
    %v560 = vadd.f32 %v456, %v559
    %v561 = vpop.f32.mrf.mxu0
    %562 = vmatprep.mubr.f32.mxu0 0.0
    %563 = vmatmul.mubr.f32.gmra.mxu0 %v418
    %v564 = vpop.f32.mrf.mxu0
    %v565 = vadd.f32 %v461, %v564
    %v566 = vpop.f32.mrf.mxu0
    %567 = vmatprep.mubr.f32.mxu0 0.0
    %568 = vmatmul.mubr.f32.gmra.mxu0 %v419
    %v569 = vpop.f32.mrf.mxu0
    %v570 = vadd.f32 %v466, %v569
    %v571 = vpop.f32.mrf.mxu0
    %572 = vdwg.mxu0
    %v573 = vtanh.pop %v535
    %v574 = vtanh.pop %v540
    %v575 = vtanh.pop %v545
    %v576 = vtanh.pop %v550
    %v577 = vtanh.pop %v555
    %v578 = vtanh.pop %v560
    %v579 = vtanh.pop %v565
    %v580 = vtanh.pop %v570
    %v581 = vld [vmem:[#allocation2 + $0xc0] sm:$0xff]
    %v582 = vld [vmem:[#allocation2 + $0xc8] sm:$0xff]
    %v583 = vld [vmem:[#allocation2 + $0xd0] sm:$0xff]
    %v584 = vld [vmem:[#allocation2 + $0xd8] sm:$0xff]
    %v585 = vld [vmem:[#allocation2 + $0xf8] sm:$0xff]
    %v586 = vld [vmem:[#allocation2 + $0x100] sm:$0xff]
    %v587 = vld [vmem:[#allocation2 + $0x108] sm:$0xff]
    %v588 = vld [vmem:[#allocation2 + $0x110] sm:$0xff]
    %590 = vset.pattern.permute.xlu0 2
    %591 = vperm.xlu0 %590, %v585
    %v592 = vpop.permute.xlu0 %591
    %595 = vset.pattern.permute.xlu0 2
    %596 = vperm.xlu0 %595, %v586
    %v597 = vpop.permute.xlu0 %596
    %600 = vset.pattern.permute.xlu0 2
    %601 = vperm.xlu0 %600, %v587
    %v602 = vpop.permute.xlu0 %601
    %605 = vset.pattern.permute.xlu0 2
    %606 = vperm.xlu0 %605, %v588
    %v607 = vpop.permute.xlu0 %606
    %vm609 = vcmask 523264
    %v611 = vsel %vm609, %v581, 0
    %v614 = vsel %vm609, %v582, 0
    %v617 = vsel %vm609, %v583, 0
    %v620 = vsel %vm609, %v584, 0
    %622 = vmatprep.subr.mxu0 0.0
    %623 = vmatpush1.msra.mxu0 0.0
    %624 = vmatprep.subr.mxu0 0.0
    %625 = vmatpush1.msra.mxu0 0.0
    %626 = vmatprep.subr.mxu0 0.0
    %627 = vmatpush1.msra.mxu0 0.0
    %628 = vmatprep.subr.mxu0 0.0
    %629 = vmatpush1.msra.mxu0 0.0
    %630 = vmatprep.subr.mxu0 0.0
    %631 = vmatpush1.msra.mxu0 0.0
    %632 = vmatprep.subr.mxu0 0.0
    %633 = vmatpush1.msra.mxu0 0.0
    %634 = vmatprep.subr.mxu0 0.0
    %635 = vmatpush1.msra.mxu0 0.0
    %636 = vmatprep.subr.mxu0 0.0
    %637 = vmatpush1.msra.mxu0 0.0
    %638 = vmatprep.subr.mxu0 0.0
    %639 = vmatpush1.msra.mxu0 %v580
    %640 = vmatprep.subr.mxu0 0.0
    %641 = vmatpush1.msra.mxu0 %v579
    %642 = vmatprep.subr.mxu0 0.0
    %643 = vmatpush1.msra.mxu0 %v578
    %644 = vmatprep.subr.mxu0 0.0
    %645 = vmatpush1.msra.mxu0 %v577
    %646 = vmatprep.subr.mxu0 0.0
    %647 = vmatpush1.msra.mxu0 %v576
    %648 = vmatprep.subr.mxu0 0.0
    %649 = vmatpush1.msra.mxu0 %v575
    %650 = vmatprep.subr.mxu0 0.0
    %651 = vmatpush1.msra.mxu0 %v574
    %652 = vmatprep.subr.mxu0 0.0
    %653 = vmatpush1.msra.mxu0 %v573
    %654 = vmatprep.subr.mxu0 0.0
    %655 = vmatpush2.msra.mxu0 0.0
    %656 = vmatprep.subr.mxu0 0.0
    %657 = vmatpush2.msra.mxu0 0.0
    %658 = vmatprep.subr.mxu0 0.0
    %659 = vmatpush2.msra.mxu0 0.0
    %660 = vmatprep.subr.mxu0 0.0
    %661 = vmatpush2.msra.mxu0 0.0
    %662 = vmatprep.subr.mxu0 0.0
    %663 = vmatpush2.msra.mxu0 0.0
    %664 = vmatprep.subr.mxu0 0.0
    %665 = vmatpush2.msra.mxu0 0.0
    %666 = vmatprep.subr.mxu0 0.0
    %667 = vmatpush2.msra.mxu0 0.0
    %668 = vmatprep.subr.mxu0 0.0
    %669 = vmatpush2.msra.mxu0 0.0
    %670 = vmatprep.subr.mxu0 0.0
    %671 = vmatpush2.msra.mxu0 0.0
    %672 = vmatprep.subr.mxu0 0.0
    %673 = vmatpush2.msra.mxu0 0.0
    %674 = vmatprep.subr.mxu0 0.0
    %675 = vmatpush2.msra.mxu0 0.0
    %676 = vmatprep.subr.mxu0 0.0
    %677 = vmatpush2.msra.mxu0 0.0
    %678 = vmatprep.subr.mxu0 0.0
    %679 = vmatpush2.msra.mxu0 0.0
    %680 = vmatprep.subr.mxu0 0.0
    %681 = vmatpush2.msra.mxu0 0.0
    %682 = vmatprep.subr.mxu0 0.0
    %683 = vmatpush2.msra.mxu0 0.0
    %684 = vmatprep.subr.mxu0 0.0
    %685 = vmatpush2.msra.mxu0 0.0
    %686 = vmatprep.mubr.f32.mxu0 0.0
    %687 = vmatmul.mubr.f32.gmra.mxu0 %v611
    %v688 = vpop.f32.mrf.mxu0
    %v689 = vadd.f32 %v592, %v688
    %v690 = vpop.f32.mrf.mxu0
    %691 = vmatprep.mubr.f32.mxu0 0.0
    %692 = vmatmul.mubr.f32.gmra.mxu0 %v614
    %v693 = vpop.f32.mrf.mxu0
    %v694 = vadd.f32 %v597, %v693
    %v695 = vpop.f32.mrf.mxu0
    %696 = vmatprep.mubr.f32.mxu0 0.0
    %697 = vmatmul.mubr.f32.gmra.mxu0 %v617
    %v698 = vpop.f32.mrf.mxu0
    %v699 = vadd.f32 %v602, %v698
    %v700 = vpop.f32.mrf.mxu0
    %701 = vmatprep.mubr.f32.mxu0 0.0
    %702 = vmatmul.mubr.f32.gmra.mxu0 %v620
    %v703 = vpop.f32.mrf.mxu0
    %v704 = vadd.f32 %v607, %v703
    %v705 = vpop.f32.mrf.mxu0
    %706 = vdwg.mxu0
    %v707 = vtanh.pop %v689
    %v708 = vtanh.pop %v694
    %v709 = vtanh.pop %v699
    %v710 = vtanh.pop %v704
    %v711 = vld [vmem:[#allocation2 + $0xe0] sm:$0xff]
    %v712 = vld [vmem:[#allocation2 + $0xe8] sm:$0xff]
    %v713 = vld [vmem:[#allocation2 + $0xf8] sm:$0xff]
    %v714 = vld [vmem:[#allocation2 + $0x100] sm:$0xff]
    %716 = vset.pattern.permute.xlu0 3
    %717 = vperm.xlu0 %716, %v713
    %v718 = vpop.permute.xlu0 %717
    %721 = vset.pattern.permute.xlu0 3
    %722 = vperm.xlu0 %721, %v714
    %v723 = vpop.permute.xlu0 %722
    %v726 = vsel %vm154, %v711, 0
    %v729 = vsel %vm154, %v712, 0
    %731 = vmatprep.subr.mxu0 0.0
    %732 = vmatpush1.msra.mxu0 0.0
    %733 = vmatprep.subr.mxu0 0.0
    %734 = vmatpush1.msra.mxu0 0.0
    %735 = vmatprep.subr.mxu0 0.0
    %736 = vmatpush1.msra.mxu0 0.0
    %737 = vmatprep.subr.mxu0 0.0
    %738 = vmatpush1.msra.mxu0 0.0
    %739 = vmatprep.subr.mxu0 0.0
    %740 = vmatpush1.msra.mxu0 0.0
    %741 = vmatprep.subr.mxu0 0.0
    %742 = vmatpush1.msra.mxu0 0.0
    %743 = vmatprep.subr.mxu0 0.0
    %744 = vmatpush1.msra.mxu0 0.0
    %745 = vmatprep.subr.mxu0 0.0
    %746 = vmatpush1.msra.mxu0 0.0
    %747 = vmatprep.subr.mxu0 0.0
    %748 = vmatpush1.msra.mxu0 0.0
    %749 = vmatprep.subr.mxu0 0.0
    %750 = vmatpush1.msra.mxu0 0.0
    %751 = vmatprep.subr.mxu0 0.0
    %752 = vmatpush1.msra.mxu0 0.0
    %753 = vmatprep.subr.mxu0 0.0
    %754 = vmatpush1.msra.mxu0 0.0
    %755 = vmatprep.subr.mxu0 0.0
    %756 = vmatpush1.msra.mxu0 %v710
    %757 = vmatprep.subr.mxu0 0.0
    %758 = vmatpush1.msra.mxu0 %v709
    %759 = vmatprep.subr.mxu0 0.0
    %760 = vmatpush1.msra.mxu0 %v708
    %761 = vmatprep.subr.mxu0 0.0
    %762 = vmatpush1.msra.mxu0 %v707
    %763 = vmatprep.subr.mxu0 0.0
    %764 = vmatpush2.msra.mxu0 0.0
    %765 = vmatprep.subr.mxu0 0.0
    %766 = vmatpush2.msra.mxu0 0.0
    %767 = vmatprep.subr.mxu0 0.0
    %768 = vmatpush2.msra.mxu0 0.0
    %769 = vmatprep.subr.mxu0 0.0
    %770 = vmatpush2.msra.mxu0 0.0
    %771 = vmatprep.subr.mxu0 0.0
    %772 = vmatpush2.msra.mxu0 0.0
    %773 = vmatprep.subr.mxu0 0.0
    %774 = vmatpush2.msra.mxu0 0.0
    %775 = vmatprep.subr.mxu0 0.0
    %776 = vmatpush2.msra.mxu0 0.0
    %777 = vmatprep.subr.mxu0 0.0
    %778 = vmatpush2.msra.mxu0 0.0
    %779 = vmatprep.subr.mxu0 0.0
    %780 = vmatpush2.msra.mxu0 0.0
    %781 = vmatprep.subr.mxu0 0.0
    %782 = vmatpush2.msra.mxu0 0.0
    %783 = vmatprep.subr.mxu0 0.0
    %784 = vmatpush2.msra.mxu0 0.0
    %785 = vmatprep.subr.mxu0 0.0
    %786 = vmatpush2.msra.mxu0 0.0
    %787 = vmatprep.subr.mxu0 0.0
    %788 = vmatpush2.msra.mxu0 0.0
    %789 = vmatprep.subr.mxu0 0.0
    %790 = vmatpush2.msra.mxu0 0.0
    %791 = vmatprep.subr.mxu0 0.0
    %792 = vmatpush2.msra.mxu0 0.0
    %793 = vmatprep.subr.mxu0 0.0
    %794 = vmatpush2.msra.mxu0 0.0
    %795 = vmatprep.mubr.f32.mxu0 0.0
    %796 = vmatmul.mubr.f32.gmra.mxu0 %v726
    %v797 = vpop.f32.mrf.mxu0
    %v798 = vadd.f32 %v718, %v797
    %v799 = vpop.f32.mrf.mxu0
    %800 = vmatprep.mubr.f32.mxu0 0.0
    %801 = vmatmul.mubr.f32.gmra.mxu0 %v729
    %v802 = vpop.f32.mrf.mxu0
    %v803 = vadd.f32 %v723, %v802
    %v804 = vpop.f32.mrf.mxu0
    %805 = vdwg.mxu0
    %v806 = vtanh.pop %v798
    %v807 = vtanh.pop %v803
    %v808 = vld [vmem:[#allocation2 + $0xf0] sm:$0xff]
    %v809 = vld [vmem:[#allocation2 + $0xf8] sm:$0xff]
    %811 = vset.pattern.permute.xlu0 4
    %812 = vperm.xlu0 %811, %v809
    %v813 = vpop.permute.xlu0 %812
    %vm815 = vcmask 130048
    %v817 = vsel %vm815, %v808, 0
    %819 = vmatprep.subr.mxu0 0.0
    %820 = vmatpush1.msra.mxu0 0.0
    %821 = vmatprep.subr.mxu0 0.0
    %822 = vmatpush1.msra.mxu0 0.0
    %823 = vmatprep.subr.mxu0 0.0
    %824 = vmatpush1.msra.mxu0 0.0
    %825 = vmatprep.subr.mxu0 0.0
    %826 = vmatpush1.msra.mxu0 0.0
    %827 = vmatprep.subr.mxu0 0.0
    %828 = vmatpush1.msra.mxu0 0.0
    %829 = vmatprep.subr.mxu0 0.0
    %830 = vmatpush1.msra.mxu0 0.0
    %831 = vmatprep.subr.mxu0 0.0
    %832 = vmatpush1.msra.mxu0 0.0
    %833 = vmatprep.subr.mxu0 0.0
    %834 = vmatpush1.msra.mxu0 0.0
    %835 = vmatprep.subr.mxu0 0.0
    %836 = vmatpush1.msra.mxu0 0.0
    %837 = vmatprep.subr.mxu0 0.0
    %838 = vmatpush1.msra.mxu0 0.0
    %839 = vmatprep.subr.mxu0 0.0
    %840 = vmatpush1.msra.mxu0 0.0
    %841 = vmatprep.subr.mxu0 0.0
    %842 = vmatpush1.msra.mxu0 0.0
    %843 = vmatprep.subr.mxu0 0.0
    %844 = vmatpush1.msra.mxu0 0.0
    %845 = vmatprep.subr.mxu0 0.0
    %846 = vmatpush1.msra.mxu0 0.0
    %847 = vmatprep.subr.mxu0 0.0
    %848 = vmatpush1.msra.mxu0 %v807
    %849 = vmatprep.subr.mxu0 0.0
    %850 = vmatpush1.msra.mxu0 %v806
    %851 = vmatprep.subr.mxu0 0.0
    %852 = vmatpush2.msra.mxu0 0.0
    %853 = vmatprep.subr.mxu0 0.0
    %854 = vmatpush2.msra.mxu0 0.0
    %855 = vmatprep.subr.mxu0 0.0
    %856 = vmatpush2.msra.mxu0 0.0
    %857 = vmatprep.subr.mxu0 0.0
    %858 = vmatpush2.msra.mxu0 0.0
    %859 = vmatprep.subr.mxu0 0.0
    %860 = vmatpush2.msra.mxu0 0.0
    %861 = vmatprep.subr.mxu0 0.0
    %862 = vmatpush2.msra.mxu0 0.0
    %863 = vmatprep.subr.mxu0 0.0
    %864 = vmatpush2.msra.mxu0 0.0
    %865 = vmatprep.subr.mxu0 0.0
    %866 = vmatpush2.msra.mxu0 0.0
    %867 = vmatprep.subr.mxu0 0.0
    %868 = vmatpush2.msra.mxu0 0.0
    %869 = vmatprep.subr.mxu0 0.0
    %870 = vmatpush2.msra.mxu0 0.0
    %871 = vmatprep.subr.mxu0 0.0
    %872 = vmatpush2.msra.mxu0 0.0
    %873 = vmatprep.subr.mxu0 0.0
    %874 = vmatpush2.msra.mxu0 0.0
    %875 = vmatprep.subr.mxu0 0.0
    %876 = vmatpush2.msra.mxu0 0.0
    %877 = vmatprep.subr.mxu0 0.0
    %878 = vmatpush2.msra.mxu0 0.0
    %879 = vmatprep.subr.mxu0 0.0
    %880 = vmatpush2.msra.mxu0 0.0
    %881 = vmatprep.subr.mxu0 0.0
    %882 = vmatpush2.msra.mxu0 0.0
    %883 = vmatprep.mubr.f32.mxu0 0.0
    %884 = vmatmul.mubr.f32.gmra.mxu0 %v817
    %v885 = vpop.f32.mrf.mxu0
    %v886 = vadd.f32 %v813, %v885
    %v887 = vpop.f32.mrf.mxu0
    %888 = vdwg.mxu0
    %v890 = vrot.slane %v886, 1
    %v892 = vmul.f32 %v886, %v890
    %893 = vst [vmem:[#allocation5] sm:$0x1] %v892
    // Predicated region
    $region14: #{tpu_custom_call.1} parent=1 // pred_check
      _
    $region15: #{tpu_custom_call.1} parent=1 // pred_check_branch
      %895 = sbr.rel (0) target = $region17
    $region16: #{tpu_custom_call.1} parent=1 // pred_region
      %s897 = ssub.s32 16, 16
      %898 = vsyncadd [#allocation4], %s897
      %s900 = sshll.u32 [#allocation5], 4
      %s901 = int_to_ptr.vmem [resolvable:$true] %s900
      %903 = dma.vmem_to_hbm [thread:$0]  %s901, 16, %s2, [#allocation4]
    $region17: #{tpu_custom_call.1} parent=1 // pred_fallthru
      _
    // Predicated region
    $region18: #{tpu_custom_call.1} parent=1 // pred_check
      _
    $region19: #{tpu_custom_call.1} parent=1 // pred_check_branch
      %905 = sbr.rel (0) target = $region21
    $region20: #{tpu_custom_call.1} parent=1 // pred_region
      %906 = dma.done [#allocation4], 16
    $region21: #{tpu_custom_call.1} parent=1 // pred_fallthru
      _
    %907 = vsyncpa [#allocation3], 1
    %908 = vsyncpa [#allocation4], 1

</llo_original>
